<compile_context>
chip_gen: v5e
topology: v5e:2x2
jax: 0.10.0
libtpu: 0.0.40
codegen_flags: <defaults>
</compile_context>

<pallas_src>
import functools

import jax
import jax.numpy as jnp
from jax import lax
from jax.experimental import pallas as pl
from jax.experimental.pallas import tpu as pltpu

_EPS = 1e-12
_SUBLANES = 8                 # f32 sublanes per vreg
_DEFAULT_VMEM = 64 << 20      # conservative fallback = v7x physical VMEM per TC


def _physical_vmem_bytes() -> int:
    """Per-generation physical VMEM (fallback: v7x's 64 MiB, safe everywhere)."""
    try:
        info = pltpu.get_tpu_info()
        for name in ("vmem_capacity_bytes", "vmem_size_bytes", "vmem_bytes"):
            v = getattr(info, name, None)
            if v:
                return int(v)
    except Exception:
        pass
    return _DEFAULT_VMEM


# ---------------------------------------------------------------------------
# Kernels
# ---------------------------------------------------------------------------
def _normalize_whole_block(x_ref, o_ref):
    """Center over axis 0 and row-RMS normalize a full (n, d) tile in VMEM."""
    x = x_ref[...].astype(jnp.float32)
    n, d = x.shape
    col_mean = jnp.sum(x, axis=0, keepdims=True) * (1.0 / n)      # (1, d)
    xc = x - col_mean
    row_ms = jnp.sum(xc * xc, axis=1, keepdims=True) * (1.0 / d)  # (n, 1)
    o_ref[...] = (xc * lax.rsqrt(row_ms + _EPS)).astype(o_ref.dtype)


def _single_block_kernel(x_ref, o_ref):
    _normalize_whole_block(x_ref, o_ref)


def _graph_fused_kernel(hn_ref, he_ref, hn_out_ref, he_out_ref):
    # One launch for both tiny graph tensors (node + edge features).
    _normalize_whole_block(hn_ref, hn_out_ref)
    _normalize_whole_block(he_ref, he_out_ref)


def _colmean_kernel(x_ref, mean_ref, *, n_rows, tm, tiles_per_split, inv_n):
    """Pass 1: per-core partial column MEANS.

    Grid is (core_split, tiles_per_core). Each core owns an (8, d) resident
    output slab (all 8 sublanes hold the same values). Only tiles that overhang
    the array (partial last tile, or fully-virtual tiles from the core split)
    pay for iota+mask; interior tiles take the plain-sum path.
    """
    c = pl.program_id(0)
    j = pl.program_id(1)
    tile_idx = c * tiles_per_split + j        # virtual (unclamped) tile index
    row_start = tile_idx * tm

    @pl.when(j == 0)
    def _():
        mean_ref[...] = jnp.zeros_like(mean_ref)

    x = x_ref[...].astype(jnp.float32)

    @pl.when(row_start + tm <= n_rows)        # full interior tile: no masking
    def _():
        mean_ref[...] += jnp.sum(x, axis=0, keepdims=True)

    @pl.when(row_start + tm > n_rows)         # overhanging / virtual tile only
    def _():
        row = lax.broadcasted_iota(jnp.int32, x.shape, 0) + row_start
        xm = jnp.where(row < n_rows, x, 0.0)
        mean_ref[...] += jnp.sum(xm, axis=0, keepdims=True)

    # Fold 1/N here so pass 2 consumes ready-made partial column means.
    @pl.when(j == pl.num_programs(1) - 1)
    def _():
        mean_ref[...] *= inv_n


def _normalize_kernel(colmean_ref, x_ref, o_ref, *, n_splits, inv_d):
    """Pass 2: subtract the global column mean, per-row RMS normalize one tile."""
    x = x_ref[...].astype(jnp.float32)
    # Combine per-core partial means (already scaled by 1/N in pass 1);
    # one (1, d) add per extra core — negligible per tile.
    col_mean = colmean_ref[0:1, :]
    for c in range(1, n_splits):
        col_mean = col_mean + colmean_ref[c * _SUBLANES:c * _SUBLANES + 1, :]
    xc = x - col_mean
    row_ms = jnp.sum(xc * xc, axis=1, keepdims=True) * inv_d      # (tm, 1)
    o_ref[...] = (xc * lax.rsqrt(row_ms + _EPS)).astype(o_ref.dtype)


# ---------------------------------------------------------------------------
# Wrappers
# ---------------------------------------------------------------------------
def _sublane_align(dtype) -> int:
    """Sublane packing of the dtype: 8 for 4-byte, 16 for 2-byte, 32 for 1-byte."""
    itemsize = jnp.dtype(dtype).itemsize
    return max(_SUBLANES, 32 // max(1, itemsize))


def _choose_tm(n, d, dtype, target_bytes):
    """Rows per tile so one f32 working block is ~target_bytes, dtype-aligned."""
    align = _sublane_align(dtype)
    tm = max(align, target_bytes // max(1, d * 4))
    tm = min(tm, n)
    tm = max(align, (tm // align) * align)
    return int(tm)


def norm_layer(x: jax.Array, *, force_tiled: bool = False,
               block_target_bytes: int = 4 << 20,
               donate_x: bool = False) -> jax.Array:
    """Pallas implementation of NormLayer.forward for a 2-D (N, D) tensor."""
    assert x.ndim == 2, "NormLayer kernel expects a 2-D (N, D) tensor"
    n, d = x.shape
    out_shape = jax.ShapeDtypeStruct((n, d), x.dtype)
    itemsize = jnp.dtype(x.dtype).itemsize
    phys_vmem = _physical_vmem_bytes()

    # Fast path: whole array as one VMEM block (2x HBM traffic, one launch).
    # Cap on the f32 working-set size (kernel computes in f32 even for bf16).
    f32_bytes = n * d * 4
    single_block_cap = phys_vmem // 6   # ~21 MiB on 128-MiB VMEM, ~10.7 MiB on v7x
    if not force_tiled and f32_bytes <= single_block_cap:
        return pl.pallas_call(
            _single_block_kernel,
            out_shape=out_shape,
            in_specs=[pl.BlockSpec((n, d), lambda: (0, 0))],
            out_specs=pl.BlockSpec((n, d), lambda: (0, 0)),
            compiler_params=pltpu.CompilerParams(
                vmem_limit_bytes=(phys_vmem * 7) // 8),
            cost_estimate=pl.CostEstimate(
                flops=5 * n * d, transcendentals=n,
                bytes_accessed=2 * n * d * itemsize),
        )(x)

    # ---- tiled two-pass path ----
    tm = _choose_tm(n, d, x.dtype, block_target_bytes)
    num_tiles = int(pl.cdiv(n, tm))
    n_splits = min(2, num_tiles)          # 2 TensorCores on v7x; harmless on 1-TC chips
    tiles_per_split = int(pl.cdiv(num_tiles, n_splits))
    tiled_vmem_limit = min(32 << 20, (phys_vmem * 3) // 4)

    def p1_in_map(c, j):
        # Virtual tiles past the end re-fetch the last real tile; the kernel
        # masks their rows to zero, so correctness is unaffected.
        return (jnp.minimum(c * tiles_per_split + j, num_tiles - 1), 0)

    # Pass 1: per-core partial column means (reduction axis -> "arbitrary",
    # core-split axis -> "parallel" so both v7x TCs pull HBM bandwidth).
    col_mean_partial = pl.pallas_call(
        functools.partial(_colmean_kernel, n_rows=n, tm=tm,
                          tiles_per_split=tiles_per_split, inv_n=1.0 / n),
        out_shape=jax.ShapeDtypeStruct((n_splits * _SUBLANES, d), jnp.float32),
        grid=(n_splits, tiles_per_split),
        in_specs=[pl.BlockSpec((tm, d), p1_in_map)],
        out_specs=pl.BlockSpec((_SUBLANES, d), lambda c, j: (c, 0)),
        compiler_params=pltpu.CompilerParams(
            dimension_semantics=("parallel", "arbitrary"),
            vmem_limit_bytes=tiled_vmem_limit),
        cost_estimate=pl.CostEstimate(
            flops=n * d, transcendentals=0,
            bytes_accessed=n * d * itemsize + n_splits * _SUBLANES * d * 4),
    )(x)

    # Pass 2: independent N tiles -> "parallel" (megacore-sharded on v7x),
    # auto double-buffered DMA/compute overlap via BlockSpec pipelining.
    extra = {}
    if donate_x:
        # Only valid if the caller actually donates x to this computation.
        extra["input_output_aliases"] = {1: 0}
    return pl.pallas_call(
        functools.partial(_normalize_kernel, n_splits=n_splits, inv_d=1.0 / d),
        out_shape=out_shape,
        grid=(num_tiles,),
        in_specs=[pl.BlockSpec((n_splits * _SUBLANES, d), lambda i: (0, 0)),
                  pl.BlockSpec((tm, d), lambda i: (i, 0))],
        out_specs=pl.BlockSpec((tm, d), lambda i: (i, 0)),
        compiler_params=pltpu.CompilerParams(
            dimension_semantics=("parallel",),
            vmem_limit_bytes=tiled_vmem_limit),
        cost_estimate=pl.CostEstimate(
            flops=4 * n * d, transcendentals=n,
            bytes_accessed=2 * n * d * itemsize
                           + num_tiles * n_splits * _SUBLANES * d * 4),
        **extra,
    )(col_mean_partial, x)


def norm_layer_graph(hn: jax.Array, he: jax.Array):
    """Non-tensor branch of NormLayer: normalize node (hn) and edge (he) features
    in a single fused pallas_call (both tensors are tiny; one launch, not two)."""
    assert hn.ndim == 2 and he.ndim == 2
    return pl.pallas_call(
        _graph_fused_kernel,
        out_shape=(jax.ShapeDtypeStruct(hn.shape, hn.dtype),
                   jax.ShapeDtypeStruct(he.shape, he.dtype)),
        in_specs=[pl.BlockSpec(hn.shape, lambda: (0, 0)),
                  pl.BlockSpec(he.shape, lambda: (0, 0))],
        out_specs=(pl.BlockSpec(hn.shape, lambda: (0, 0)),
                   pl.BlockSpec(he.shape, lambda: (0, 0))),
    )(hn, he)


# ---------------------------------------------------------------------------
# Reference + test
# ---------------------------------------------------------------------------
def _reference(x):
    x = x.astype(jnp.float32)
    x = x - jnp.mean(x, axis=0, keepdims=True)
    x = x * lax.rsqrt(jnp.mean(x * x, axis=1, keepdims=True) + 1e-12)
    return x


if __name__ == "__main__":
    key = jax.random.PRNGKey(0)
    k1, k2, k3, k4 = jax.random.split(key, 4)

    # 1) Tensor branch, small shape -> single-block fast path.
    x_small = jax.random.normal(k1, (16, 32), dtype=jnp.float32)
    y_small = norm_layer(x_small)
    jax.block_until_ready(y_small)
    assert jnp.allclose(y_small, _reference(x_small), atol=1e-5, rtol=1e-5)

    # 2) Tensor branch, 3 MiB f32 -> now also the single-block fast path
    #    (threshold raised well above 2 MiB per the perf review).
    x_big = jax.random.normal(k2, (2048, 384), dtype=jnp.float32)
    y_fast = norm_layer(x_big)
    jax.block_until_ready(y_fast)
    assert jnp.allclose(y_fast, _reference(x_big), atol=1e-4, rtol=1e-4)

    # 3) Same input forced down the tiled two-pass path with small blocks:
    #    exercises full tiles, the masked partial last tile, the fully-virtual
    #    tile from the 2-core split, and the folded-1/N partial means.
    y_tiled = norm_layer(x_big, force_tiled=True, block_target_bytes=256 * 1024)
    jax.block_until_ready(y_tiled)
    assert jnp.allclose(y_tiled, _reference(x_big), atol=1e-4, rtol=1e-4)

    # 3b) Tiled path with default block target (degenerates to a single tile).
    y_tiled1 = norm_layer(x_big, force_tiled=True)
    jax.block_until_ready(y_tiled1)
    assert jnp.allclose(y_tiled1, _reference(x_big), atol=1e-4, rtol=1e-4)

    # 4) bf16 input through the tiled path: checks dtype-aware sublane alignment
    #    (tm multiple of 16) and masking with a packed dtype.
    x_bf16 = jax.random.normal(k4, (304, 256), dtype=jnp.bfloat16)
    y_bf16 = norm_layer(x_bf16, force_tiled=True, block_target_bytes=64 * 1024)
    jax.block_until_ready(y_bf16)
    assert jnp.allclose(y_bf16.astype(jnp.float32), _reference(x_bf16),
                        atol=5e-2, rtol=5e-2)

    # 5) Graph branch: node features hn (8, 32) and edge features he (24, 32),
    #    fused into one pallas_call.
    hn = jax.random.normal(k3, (8, 32), dtype=jnp.float32)
    he = jax.random.normal(jax.random.fold_in(k3, 1), (24, 32), dtype=jnp.float32)
    hn_o, he_o = norm_layer_graph(hn, he)
    jax.block_until_ready((hn_o, he_o))
    assert jnp.allclose(hn_o, _reference(hn), atol=1e-5, rtol=1e-5)
    assert jnp.allclose(he_o, _reference(he), atol=1e-5, rtol=1e-5)

    print("KERNEL_OK")
</pallas_src>

<mosaic_0001>
module attributes {stable_mosaic.version = 11 : i64} {
  func.func @_single_block_kernel(%arg0: memref<16x32xf32, #tpu.memory_space<vmem>>, %arg1: memref<16x32xf32, #tpu.memory_space<vmem>>) attributes {dimension_semantics = [], scalar_prefetch = 0 : i64, scratch_operands = 0 : i64, tpu.core_type = #tpu.core_type<tc>} {
    %c0 = arith.constant 0 : index
    %c0_0 = arith.constant 0 : index
    %0 = vector.load %arg0[%c0, %c0_0] : memref<16x32xf32, #tpu.memory_space<vmem>>, vector<16x32xf32>
    %cst = arith.constant dense<0.000000e+00> : vector<32xf32>
    %1 = vector.multi_reduction <add>, %0, %cst [0] : vector<16x32xf32> to vector<32xf32>
    %2 = vector.shape_cast %1 : vector<32xf32> to vector<1x32xf32>
    %cst_1 = arith.constant 6.250000e-02 : f32
    %3 = vector.broadcast %cst_1 : f32 to vector<1x32xf32>
    %4 = arith.mulf %2, %3 : vector<1x32xf32>
    %5 = vector.broadcast %4 : vector<1x32xf32> to vector<16x32xf32>
    %6 = arith.subf %0, %5 : vector<16x32xf32>
    %7 = arith.mulf %6, %6 : vector<16x32xf32>
    %cst_2 = arith.constant dense<0.000000e+00> : vector<16xf32>
    %8 = vector.multi_reduction <add>, %7, %cst_2 [1] : vector<16x32xf32> to vector<16xf32>
    %9 = vector.shape_cast %8 : vector<16xf32> to vector<16x1xf32>
    %cst_3 = arith.constant 3.125000e-02 : f32
    %10 = vector.broadcast %cst_3 : f32 to vector<16x1xf32>
    %11 = arith.mulf %9, %10 : vector<16x1xf32>
    %cst_4 = arith.constant 9.99999996E-13 : f32
    %12 = vector.broadcast %cst_4 : f32 to vector<16x1xf32>
    %13 = arith.addf %11, %12 : vector<16x1xf32>
    %14 = math.rsqrt %13 : vector<16x1xf32>
    %15 = vector.broadcast %14 : vector<16x1xf32> to vector<16x32xf32>
    %16 = arith.mulf %6, %15 : vector<16x32xf32>
    %c0_5 = arith.constant 0 : index
    %c0_6 = arith.constant 0 : index
    %17 = vector.load %arg1[%c0_5, %c0_6] : memref<16x32xf32, #tpu.memory_space<vmem>>, vector<16x32xf32>
    tpu.vector_store %arg1[%c0_5, %c0_6], %16 {strides = array<i32>} : memref<16x32xf32, #tpu.memory_space<vmem>>, vector<16x32xf32>,
    return
  }
}

</mosaic_0001>

<llo_original>
// kernel: tpu_custom_call.1
$region0: #{tpu_custom_call.1}
  #allocation0 [shape = 'u32[]', space=smem, size = 0x4, offset = 0x4, fixed_abs, tag = 'smem constant byte address 0x4 - core index']
  #allocation1 [shape = 'u32[72,128]{1,0:T(1,128)}', space=vmem, size = 0x9000, scoped, tag = 'internal scratch']
  %s0 = inlined_call_operand.hbm [shape: f32[16,32], index: 0, kind: input, shape index: {}]
  %s1 = inlined_call_operand.hbm [shape: f32[16,32], index: 1, kind: output, shape index: {}]
  %s2 = sld [smem:[#allocation0]]
  $region18: #{tpu_custom_call.1} parent=0
    _
  %s4 = ssub.s32 1, %s2
  %s5 = scalar_select 0, %s4, %s2
  $region1: #{tpu_custom_call.1} parent=0
    #allocation2 [shape = 'u8[8192]{0}', space=vmem, size = 0x2000, scoped, tag = 'input window, operand 0, single buffered']
    #allocation3 [shape = 's32[1]{0}', space=sflag, size = 0x4, scoped, tag = 'scoped memory for tpu_custom_call.1']
    #allocation4 [shape = 's32[1]{0}', space=sflag, size = 0x4, scoped, tag = 'scoped memory for tpu_custom_call.1']
    #allocation5 [shape = 'u8[8192]{0}', space=vmem, size = 0x2000, scoped, tag = 'output window, operand 0, single buffered']
    %6 = vsyncpa [#allocation3], 0
    %7 = vsyncpa [#allocation4], 0
    // Predicated region
    $region2: #{tpu_custom_call.1} parent=1 // pred_check
      _
    $region3: #{tpu_custom_call.1} parent=1 // pred_check_branch
      %9 = sbr.rel (0) target = $region5
    $region4: #{tpu_custom_call.1} parent=1 // pred_region
      %11 = vsyncadd [#allocation3], 0
      %s12 = sshll.u32 %s0, 4
      %s13 = int_to_ptr.hbm [resolvable:$true] %s12
      %s14 = sshll.u32 [#allocation2], 4
      %s15 = int_to_ptr.vmem [resolvable:$true] %s14
      %20 = dma.hbm_to_vmem [thread:$0]  %s13, 256, %s15, [#allocation3], 128, 128, 8
    $region5: #{tpu_custom_call.1} parent=1 // pred_fallthru
      _
    // Predicated region
    $region6: #{tpu_custom_call.1} parent=1 // pred_check
      _
    $region7: #{tpu_custom_call.1} parent=1 // pred_check_branch
      %22 = sbr.rel (0) target = $region9
    $region8: #{tpu_custom_call.1} parent=1 // pred_region
      %24 = dma.done [#allocation3], 256
    $region9: #{tpu_custom_call.1} parent=1 // pred_fallthru
      _
    %v25 = vld [vmem:[#allocation2] sm:$0xff]
    %v26 = vld [vmem:[#allocation2 + $0x8] sm:$0xff]
    %vm27 = vcmask 261120
    %v28 = vsel %vm27, %v25, 0.0
    %v29 = vsel %vm27, %v26, 0.0
    %v30 = vadd.f32 %v28, %v29
    %v31 = vrot.slane %v30, 4
    %v32 = vadd.f32 %v30, %v31
    %v33 = vrot.slane %v32, 2
    %v34 = vadd.f32 %v32, %v33
    %v35 = vrot.slane %v34, 1
    %v36 = vadd.f32 %v34, %v35
    %v37 = vmul.f32 %v36, 0.0625
    %v38 = vsub.f32 %v25, %v37
    %v39 = vsub.f32 %v26, %v37
    %v40 = vmul.f32 %v38, %v38
    %v41 = vmul.f32 %v39, %v39
    %v42 = vsel %vm27, %v40, 0.0
    %43 = vadd.xlane.f32.xlu0 %v42
    %v44 = vpop.xlane.xlu0 %43
    %v45 = vsel %vm27, %v41, 0.0
    %46 = vadd.xlane.f32.xlu0 %v45
    %v47 = vpop.xlane.xlu0 %46
    %v48 = vmul.f32 %v44, 0.03125
    %v49 = vmul.f32 %v47, 0.03125
    %v50 = vadd.f32 %v48, 1e-12
    %v51 = vadd.f32 %v49, 1e-12
    %v52 = vrsqrt.pop %v50
    %v53 = vmul.f32 %v52, %v50
    %v54 = vmul.f32 %v53, %v52
    %v55 = vmul.f32 0.5, %v54
    %v56 = vsub.f32 1.5, %v55
    %v57 = vmul.f32 %v52, %v56
    %vm58 = vweird.f32 %v50
    %vm59 = vweird.f32 %v52
    %vm60 = vmor %vm58, %vm59
    %v61 = vsel %vm60, %v52, %v57
    %v62 = vrsqrt.pop %v51
    %v63 = vmul.f32 %v62, %v51
    %v64 = vmul.f32 %v63, %v62
    %v65 = vmul.f32 0.5, %v64
    %v66 = vsub.f32 1.5, %v65
    %v67 = vmul.f32 %v62, %v66
    %vm68 = vweird.f32 %v51
    %vm69 = vweird.f32 %v62
    %vm70 = vmor %vm68, %vm69
    %v71 = vsel %vm70, %v62, %v67
    %v72 = vmul.f32 %v38, %v61
    %v73 = vmul.f32 %v39, %v71
    %74 = vst.msk [vmem:[#allocation5] sm:$0xff] %vm27, %v72
    %75 = vst.msk [vmem:[#allocation5 + $0x8] sm:$0xff] %vm27, %v73
    // Predicated region
    $region10: #{tpu_custom_call.1} parent=1 // pred_check
      _
    $region11: #{tpu_custom_call.1} parent=1 // pred_check_branch
      %77 = sbr.rel (0) target = $region13
    $region12: #{tpu_custom_call.1} parent=1 // pred_region
      %79 = vsyncadd [#allocation4], 0
      %s80 = sshll.u32 [#allocation5], 4
      %s81 = int_to_ptr.vmem [resolvable:$true] %s80
      %s82 = sshll.u32 %s1, 4
      %s83 = int_to_ptr.hbm [resolvable:$true] %s82
      %88 = dma.vmem_to_hbm [thread:$0]  %s81, 256, %s83, [#allocation4], 128, 128, 8
    $region13: #{tpu_custom_call.1} parent=1 // pred_fallthru
      _
    // Predicated region
    $region14: #{tpu_custom_call.1} parent=1 // pred_check
      _
    $region15: #{tpu_custom_call.1} parent=1 // pred_check_branch
      %90 = sbr.rel (0) target = $region17
    $region16: #{tpu_custom_call.1} parent=1 // pred_region
      %92 = dma.done [#allocation4], 256
    $region17: #{tpu_custom_call.1} parent=1 // pred_fallthru
      _
    %93 = vsyncpa [#allocation3], 1
    %94 = vsyncpa [#allocation4], 1

</llo_original>
